<compile_context>
chip_gen: v5e
topology: v5e:2x2
jax: 0.10.0
libtpu: 0.0.40
codegen_flags: <defaults>
</compile_context>

<pallas_src>
import jax
import jax.numpy as jnp
from jax.experimental import pallas as pl
from jax.experimental.pallas import tpu as pltpu


def _self_attention_kernel(x_ref, xq_ref, mt_ref, bvec_ref, wvt_ref, bv_ref,
                           gamma_ref, out_ref):
    x = x_ref[...]                                # (C, N)  f32, keys/values source
    xq = xq_ref[...]                              # (C, TQ) f32, this query tile

    x_bf = x.astype(jnp.bfloat16)
    xq_bf = xq.astype(jnp.bfloat16)
    mt_bf = mt_ref[...].astype(jnp.bfloat16)      # (C, C)  = (Wq Wk^T)^T
    wvt_bf = wvt_ref[...].astype(jnp.bfloat16)    # (C, C)  = Wv^T

    # Fused QK^T: energyT[m, n] = x_m^T M^T x_n + bvec . x_m   (row-constant
    # query-side bias terms cancel in the softmax over m).
    t = jnp.dot(mt_bf, xq_bf, preferred_element_type=jnp.float32) + bvec_ref[...]
    energy_t = jax.lax.dot_general(                # (N, TQ), contraction over C
        x_bf, t.astype(jnp.bfloat16),
        dimension_numbers=(((0,), (0,)), ((), ())),
        preferred_element_type=jnp.float32)

    # Softmax over keys (axis 0), f32 on VPU/EUP; divide -> approx reciprocal.
    m_max = jnp.max(energy_t, axis=0, keepdims=True)           # (1, TQ)
    p = jnp.exp(energy_t - m_max)                               # (N, TQ)
    denom = jnp.sum(p, axis=0, keepdims=True)                   # (1, TQ)
    attn_t = p * pl.reciprocal(denom, approx=True)              # (N, TQ)

    # Value projection (C, N) and attention-weighted combine -> (C, TQ).
    v_t = jnp.dot(wvt_bf, x_bf, preferred_element_type=jnp.float32) + bv_ref[...]
    out = jnp.dot(v_t.astype(jnp.bfloat16), attn_t.astype(jnp.bfloat16),
                  preferred_element_type=jnp.float32)           # (C, TQ)

    gamma = gamma_ref[0]                                        # scalar from SMEM
    out_ref[...] = gamma * out + xq


def self_attention_pallas(x_nchw, wq, bq, wk, bk, wv, bv, gamma):
    """x_nchw: (B, C, W, H) float32. Conv 1x1 weights stored as (C_in, C_out)."""
    B, C, W, H = x_nchw.shape
    N = W * H

    # Natural NCHW view — no HBM transpose passes.
    x_bcn = x_nchw.reshape(B, C, N)

    # Fused / reshaped parameters (tiny, done once outside the kernel).
    mt = wk @ wq.T                    # (C, C)  = (Wq Wk^T)^T
    bvec = (wk @ bq).reshape(C, 1)    # (C, 1)  key-side bias coefficient
    wvt = wv.T                        # (C, C)  = Wv^T
    bv_col = bv.reshape(C, 1)
    gamma1 = gamma.reshape(1)

    # Query-row tile: lane-dense (multiple of 128) when possible.
    TQ = 128 if N % 128 == 0 else N
    nq = N // TQ

    out_bcn = pl.pallas_call(
        _self_attention_kernel,
        out_shape=jax.ShapeDtypeStruct((B, C, N), jnp.float32),
        grid=(B, nq),
        in_specs=[
            pl.BlockSpec((None, C, N), lambda b, j: (b, 0, 0)),    # x  (full keys/values)
            pl.BlockSpec((None, C, TQ), lambda b, j: (b, 0, j)),   # x  (query tile)
            pl.BlockSpec((C, C), lambda b, j: (0, 0)),             # M^T
            pl.BlockSpec((C, 1), lambda b, j: (0, 0)),             # bvec
            pl.BlockSpec((C, C), lambda b, j: (0, 0)),             # Wv^T
            pl.BlockSpec((C, 1), lambda b, j: (0, 0)),             # bv
            pl.BlockSpec(memory_space=pltpu.MemorySpace.SMEM),     # gamma (scalar)
        ],
        out_specs=pl.BlockSpec((None, C, TQ), lambda b, j: (b, 0, j)),
        compiler_params=pltpu.CompilerParams(
            dimension_semantics=("parallel", "parallel")),
    )(x_bcn, x_bcn, mt, bvec, wvt, bv_col, gamma1)

    return out_bcn.reshape(B, C, W, H)


def self_attention_reference(x_nchw, wq, bq, wk, bk, wv, bv, gamma):
    """Pure-JAX f32 reference mirroring the PyTorch forward exactly."""
    B, C, W, H = x_nchw.shape
    N = W * H
    x_bcn = x_nchw.reshape(B, C, N)
    q = jnp.einsum('io,bin->bon', wq, x_bcn) + bq[None, :, None]   # (B, Cq, N)
    k = jnp.einsum('io,bin->bon', wk, x_bcn) + bk[None, :, None]   # (B, Cq, N)
    v = jnp.einsum('io,bin->bon', wv, x_bcn) + bv[None, :, None]   # (B, C, N)
    proj_query = jnp.transpose(q, (0, 2, 1))                       # (B, N, Cq)
    energy = jnp.einsum('bnc,bcm->bnm', proj_query, k)             # (B, N, N)
    attn = jax.nn.softmax(energy, axis=-1)
    out = jnp.einsum('bcm,bnm->bcn', v, attn)                      # (B, C, N)
    out = out.reshape(B, C, W, H)
    return gamma[0] * out + x_nchw


if __name__ == "__main__":
    B, C, W, H = 2, 16, 16, 16
    Cq = C // 8  # = 2

    key = jax.random.PRNGKey(0)
    ks = jax.random.split(key, 8)

    x = jax.random.normal(ks[0], (B, C, W, H), dtype=jnp.float32)

    # Conv2d 1x1 weights stored as (C_in, C_out).
    wq = jax.random.normal(ks[1], (C, Cq), dtype=jnp.float32) * 0.1
    bq = jax.random.normal(ks[2], (Cq,), dtype=jnp.float32) * 0.1
    wk = jax.random.normal(ks[3], (C, Cq), dtype=jnp.float32) * 0.1
    bk = jax.random.normal(ks[4], (Cq,), dtype=jnp.float32) * 0.1
    wv = jax.random.normal(ks[5], (C, C), dtype=jnp.float32) * 0.1
    bv = jax.random.normal(ks[6], (C,), dtype=jnp.float32) * 0.1
    # PyTorch inits gamma to 0 (which makes out == x); use a nonzero value so
    # the attention path is actually exercised.
    gamma = jnp.array([0.5], dtype=jnp.float32)

    out = self_attention_pallas(x, wq, bq, wk, bk, wv, bv, gamma)
    out = jax.block_until_ready(out)

    ref = self_attention_reference(x, wq, bq, wk, bk, wv, bv, gamma)
    assert out.shape == (B, C, W, H)
    # Tolerance relaxed vs. v1: bf16 MXU operands, Wq·Wk^T fusion, and approx
    # reciprocal change rounding slightly (observed error << 1e-2).
    assert jnp.allclose(out, ref, atol=2e-2, rtol=2e-2), "mismatch vs reference"

    print("KERNEL_OK")
</pallas_src>

<mosaic_0001>
module attributes {stable_mosaic.version = 11 : i64} {
  func.func @_self_attention_kernel(%arg0: i32, %arg1: i32, %arg2: memref<1x16x256xf32, #tpu.memory_space<vmem>>, %arg3: memref<1x16x128xf32, #tpu.memory_space<vmem>>, %arg4: memref<16x16xf32, #tpu.memory_space<vmem>>, %arg5: memref<16x1xf32, #tpu.memory_space<vmem>>, %arg6: memref<16x16xf32, #tpu.memory_space<vmem>>, %arg7: memref<16x1xf32, #tpu.memory_space<vmem>>, %arg8: memref<1xf32, #tpu.memory_space<smem>>, %arg9: memref<1x16x128xf32, #tpu.memory_space<vmem>>) attributes {dimension_semantics = [#tpu.dimension_semantics<parallel>, #tpu.dimension_semantics<parallel>], iteration_bounds = array<i64: 2, 2>, scalar_prefetch = 0 : i64, scratch_operands = 0 : i64, tpu.core_type = #tpu.core_type<tc>, window_params = [{transform_indices = @transform_0, window_bounds = array<i64: 1, 16, 256>}, {transform_indices = @transform_1, window_bounds = array<i64: 1, 16, 128>}, {pipeline_mode = #tpu.pipeline_mode<synchronous>, transform_indices = @transform_2, window_bounds = array<i64: 16, 16>}, {pipeline_mode = #tpu.pipeline_mode<synchronous>, transform_indices = @transform_3, window_bounds = array<i64: 16, 1>}, {pipeline_mode = #tpu.pipeline_mode<synchronous>, transform_indices = @transform_4, window_bounds = array<i64: 16, 16>}, {pipeline_mode = #tpu.pipeline_mode<synchronous>, transform_indices = @transform_5, window_bounds = array<i64: 16, 1>}, {transform_indices = @transform_6, window_bounds = array<i64: 1>}, {transform_indices = @transform_7, window_bounds = array<i64: 1, 16, 128>}]} {
    %c0 = arith.constant 0 : index
    %c0_0 = arith.constant 0 : index
    %c0_1 = arith.constant 0 : index
    %0 = vector.load %arg2[%c0, %c0_0, %c0_1] : memref<1x16x256xf32, #tpu.memory_space<vmem>>, vector<1x16x256xf32>
    %1 = vector.shape_cast %0 : vector<1x16x256xf32> to vector<16x256xf32>
    %c0_2 = arith.constant 0 : index
    %c0_3 = arith.constant 0 : index
    %c0_4 = arith.constant 0 : index
    %2 = vector.load %arg3[%c0_2, %c0_3, %c0_4] : memref<1x16x128xf32, #tpu.memory_space<vmem>>, vector<1x16x128xf32>
    %3 = vector.shape_cast %2 : vector<1x16x128xf32> to vector<16x128xf32>
    %4 = arith.truncf %1 : vector<16x256xf32> to vector<16x256xbf16>
    %5 = arith.truncf %3 : vector<16x128xf32> to vector<16x128xbf16>
    %c0_5 = arith.constant 0 : index
    %c0_6 = arith.constant 0 : index
    %6 = vector.load %arg4[%c0_5, %c0_6] : memref<16x16xf32, #tpu.memory_space<vmem>>, vector<16x16xf32>
    %7 = arith.truncf %6 : vector<16x16xf32> to vector<16x16xbf16>
    %c0_7 = arith.constant 0 : index
    %c0_8 = arith.constant 0 : index
    %8 = vector.load %arg6[%c0_7, %c0_8] : memref<16x16xf32, #tpu.memory_space<vmem>>, vector<16x16xf32>
    %9 = arith.truncf %8 : vector<16x16xf32> to vector<16x16xbf16>
    %cst = arith.constant dense<0.000000e+00> : vector<16x128xf32>
    %10 = tpu.matmul %7, %5, %cst {dimension_numbers = #tpu.dot_dimension_numbers<[1], [0], [0], [1], [0, 0, 1, 1], [], []>} : vector<16x16xbf16>, vector<16x128xbf16>, vector<16x128xf32> -> vector<16x128xf32>
    %c0_9 = arith.constant 0 : index
    %c0_10 = arith.constant 0 : index
    %11 = vector.load %arg5[%c0_9, %c0_10] : memref<16x1xf32, #tpu.memory_space<vmem>>, vector<16x1xf32>
    %12 = vector.broadcast %11 : vector<16x1xf32> to vector<16x128xf32>
    %13 = arith.addf %10, %12 : vector<16x128xf32>
    %14 = arith.truncf %13 : vector<16x128xf32> to vector<16x128xbf16>
    %cst_11 = arith.constant dense<0.000000e+00> : vector<256x128xf32>
    %15 = tpu.matmul %4, %14, %cst_11 {dimension_numbers = #tpu.dot_dimension_numbers<[0], [0], [1], [1], [0, 1, 1, 1], [], []>} : vector<16x256xbf16>, vector<16x128xbf16>, vector<256x128xf32> -> vector<256x128xf32>
    %cst_12 = arith.constant dense<0xFF800000> : vector<128xf32>
    %16 = vector.multi_reduction <maximumf>, %15, %cst_12 [0] : vector<256x128xf32> to vector<128xf32>
    %17 = vector.shape_cast %16 : vector<128xf32> to vector<1x128xf32>
    %18 = vector.broadcast %17 : vector<1x128xf32> to vector<256x128xf32>
    %19 = arith.subf %15, %18 : vector<256x128xf32>
    %20 = math.exp %19 : vector<256x128xf32>
    %cst_13 = arith.constant dense<0.000000e+00> : vector<128xf32>
    %21 = vector.multi_reduction <add>, %20, %cst_13 [0] : vector<256x128xf32> to vector<128xf32>
    %22 = vector.shape_cast %21 : vector<128xf32> to vector<1x128xf32>
    %23 = tpu.reciprocal %22 {approx = true} : vector<1x128xf32> -> vector<1x128xf32>
    %24 = vector.broadcast %23 : vector<1x128xf32> to vector<256x128xf32>
    %25 = arith.mulf %20, %24 : vector<256x128xf32>
    %cst_14 = arith.constant dense<0.000000e+00> : vector<16x256xf32>
    %26 = tpu.matmul %9, %4, %cst_14 {dimension_numbers = #tpu.dot_dimension_numbers<[1], [0], [0], [1], [0, 0, 1, 1], [], []>} : vector<16x16xbf16>, vector<16x256xbf16>, vector<16x256xf32> -> vector<16x256xf32>
    %c0_15 = arith.constant 0 : index
    %c0_16 = arith.constant 0 : index
    %27 = vector.load %arg7[%c0_15, %c0_16] : memref<16x1xf32, #tpu.memory_space<vmem>>, vector<16x1xf32>
    %28 = vector.broadcast %27 : vector<16x1xf32> to vector<16x256xf32>
    %29 = arith.addf %26, %28 : vector<16x256xf32>
    %30 = arith.truncf %29 : vector<16x256xf32> to vector<16x256xbf16>
    %31 = arith.truncf %25 : vector<256x128xf32> to vector<256x128xbf16>
    %cst_17 = arith.constant dense<0.000000e+00> : vector<16x128xf32>
    %32 = tpu.matmul %30, %31, %cst_17 {dimension_numbers = #tpu.dot_dimension_numbers<[1], [0], [0], [1], [0, 0, 1, 1], [], []>} : vector<16x256xbf16>, vector<256x128xbf16>, vector<16x128xf32> -> vector<16x128xf32>
    %c0_18 = arith.constant 0 : index
    %33 = memref.load %arg8[%c0_18] : memref<1xf32, #tpu.memory_space<smem>>
    %34 = vector.broadcast %33 : f32 to vector<16x128xf32>
    %35 = arith.mulf %34, %32 : vector<16x128xf32>
    %36 = arith.addf %35, %3 : vector<16x128xf32>
    %c0_19 = arith.constant 0 : index
    %c0_20 = arith.constant 0 : index
    %c0_21 = arith.constant 0 : index
    %37 = vector.load %arg9[%c0_19, %c0_20, %c0_21] : memref<1x16x128xf32, #tpu.memory_space<vmem>>, vector<1x16x128xf32>
    %38 = vector.shape_cast %37 : vector<1x16x128xf32> to vector<16x128xf32>
    %39 = vector.shape_cast %36 : vector<16x128xf32> to vector<1x16x128xf32>
    tpu.vector_store %arg9[%c0_19, %c0_20, %c0_21], %39 {strides = array<i32>} : memref<1x16x128xf32, #tpu.memory_space<vmem>>, vector<1x16x128xf32>,
    return
  }
  func.func @transform_0(%arg0: i32, %arg1: i32) -> (i32, i32, i32) {
    %c0_i32 = arith.constant 0 : i32
    %c0_i32_0 = arith.constant 0 : i32
    %c0_i32_1 = arith.constant 0 : i32
    return %arg0, %c0_i32, %c0_i32_0 : i32, i32, i32
  }
  func.func @transform_1(%arg0: i32, %arg1: i32) -> (i32, i32, i32) {
    %c0_i32 = arith.constant 0 : i32
    %c0_i32_0 = arith.constant 0 : i32
    return %arg0, %c0_i32, %arg1 : i32, i32, i32
  }
  func.func @transform_2(%arg0: i32, %arg1: i32) -> (i32, i32) {
    %c0_i32 = arith.constant 0 : i32
    %c0_i32_0 = arith.constant 0 : i32
    %c0_i32_1 = arith.constant 0 : i32
    return %c0_i32, %c0_i32_0 : i32, i32
  }
  func.func @transform_3(%arg0: i32, %arg1: i32) -> (i32, i32) {
    %c0_i32 = arith.constant 0 : i32
    %c0_i32_0 = arith.constant 0 : i32
    %c0_i32_1 = arith.constant 0 : i32
    return %c0_i32, %c0_i32_0 : i32, i32
  }
  func.func @transform_4(%arg0: i32, %arg1: i32) -> (i32, i32) {
    %c0_i32 = arith.constant 0 : i32
    %c0_i32_0 = arith.constant 0 : i32
    %c0_i32_1 = arith.constant 0 : i32
    return %c0_i32, %c0_i32_0 : i32, i32
  }
  func.func @transform_5(%arg0: i32, %arg1: i32) -> (i32, i32) {
    %c0_i32 = arith.constant 0 : i32
    %c0_i32_0 = arith.constant 0 : i32
    %c0_i32_1 = arith.constant 0 : i32
    return %c0_i32, %c0_i32_0 : i32, i32
  }
  func.func @transform_6(%arg0: i32, %arg1: i32) -> i32 {
    %c0_i32 = arith.constant 0 : i32
    %c0_i32_0 = arith.constant 0 : i32
    return %c0_i32 : i32
  }
  func.func @transform_7(%arg0: i32, %arg1: i32) -> (i32, i32, i32) {
    %c0_i32 = arith.constant 0 : i32
    %c0_i32_0 = arith.constant 0 : i32
    return %arg0, %c0_i32, %arg1 : i32, i32, i32
  }
}

</mosaic_0001>

<llo_original>
// kernel: tpu_custom_call.1
$region0: #{tpu_custom_call.1}
  #allocation0 [shape = 'u32[]', space=smem, size = 0x4, offset = 0x4, fixed_abs, tag = 'smem constant byte address 0x4 - core index']
  #allocation1 [shape = 'u32[72,128]{1,0:T(1,128)}', space=vmem, size = 0x9000, scoped, tag = 'internal scratch']
  #allocation2 [shape = 'f32[1]{0:T(128)S(6)}', space=smem, size = 0x200, scoped, tag = 'scoped memory for tpu_custom_call.1']
  %s0 = inlined_call_operand.hbm [shape: f32[2,16,256], index: 0, kind: input, shape index: {}]
  %s1 = inlined_call_operand.hbm [shape: f32[2,16,256], index: 1, kind: input, shape index: {}]
  %s2 = inlined_call_operand.vmem [shape: f32[16,16], index: 2, kind: input, shape index: {}]
  %s3 = inlined_call_operand.vmem [shape: f32[16,1], index: 3, kind: input, shape index: {}]
  %s4 = inlined_call_operand.vmem [shape: f32[16,16], index: 4, kind: input, shape index: {}]
  %s5 = inlined_call_operand.vmem [shape: f32[16,1], index: 5, kind: input, shape index: {}]
  %s6 = inlined_call_operand.<no memory space> [shape: f32[1], index: 6, kind: input, shape index: {}]
  %s7 = inlined_call_operand.hbm [shape: f32[2,16,256], index: 7, kind: output, shape index: {}]
  %s8 = sld [smem:[#allocation0]]
  $region69: #{tpu_custom_call.1} parent=0
    _
  %s10 = ssub.s32 1, %s8
  %s11 = scalar_select 0, %s10, %s8
  %12 = sst [smem:[#allocation2]] %s6
  $region1: #{tpu_custom_call.1} parent=0
    #allocation3 [shape = 'u8[32768]{0}', space=vmem, size = 0x8000, scoped, tag = 'input window, operand 0']
    #allocation4 [shape = 's32[2]{0}', space=sflag, size = 0x8, scoped, tag = 'scoped memory for tpu_custom_call.1']
    #allocation5 [shape = 's32[2]{0}', space=sflag, size = 0x8, scoped, tag = 'scoped memory for tpu_custom_call.1']
    #allocation6 [shape = 'u8[16384]{0}', space=vmem, size = 0x4000, scoped, tag = 'input window, operand 1']
    #allocation7 [shape = 's32[2]{0}', space=sflag, size = 0x8, scoped, tag = 'scoped memory for tpu_custom_call.1']
    #allocation8 [shape = 'u8[16384]{0}', space=vmem, size = 0x4000, scoped, tag = 'output window, operand 0']
    %13 = vsyncpa [#allocation4], 0
    %s14 = scalar_lea.sflag [#allocation4], 1
    %15 = vsyncpa %s14, 0
    %16 = vsyncpa [#allocation7], 0
    %s17 = scalar_lea.sflag [#allocation7], 1
    %18 = vsyncpa %s17, 0
    %19 = vsyncpa [#allocation5], 0
    %s20 = scalar_lea.sflag [#allocation5], 1
    %21 = vsyncpa %s20, 0
    loop: start=0, step=1, limit=6
    $region2: #{tpu_custom_call.1} parent=1 // loop_pre_header
      _
    $region3: #{tpu_custom_call.1} parent=1 // loop_header
      %s23 = sphi 0, %s27
      %p24 = scmp.ge.s32.totalorder %s23, 6
      %s30 = sphi 0, %s42
      %s31 = sphi 0, %s38
      %s32 = sphi 0, %s30
      %s33 = sphi 0, %s31
      %s34 = sphi 0, %s32
      %s35 = sphi 0, %s33
      %s45 = sphi 0, %s47
      %s48 = sphi 0, %s45
      %s49 = sphi 0, %s48
      %s65 = sphi 0, %s49
      %s73 = sphi 0, %s75
      %s76 = sphi 0, %s73
      %s77 = sphi 0, %s76
      %s93 = sphi 0, %s77
      %s97 = sphi 0, %s97
      %s99 = sphi 0, %s97
      %s100 = sphi 0, %s99
      %s114 = sphi 0, %s100
      %s118 = sphi 0, %s118
      %s120 = sphi 0, %s118
      %s121 = sphi 0, %s120
      %s135 = sphi 0, %s121
      %s139 = sphi 0, %s139
      %s141 = sphi 0, %s139
      %s142 = sphi 0, %s141
      %s156 = sphi 0, %s142
      %s160 = sphi 0, %s160
      %s162 = sphi 0, %s160
      %s163 = sphi 0, %s162
      %s177 = sphi 0, %s163
      %s181 = sphi 0, %s181
      %s183 = sphi 0, %s181
      %s184 = sphi 0, %s183
      %s198 = sphi 0, %s184
      %s206 = sphi 0, %s208
      %s209 = sphi 0, %s206
      %s210 = sphi 0, %s209
      %s226 = sphi 0, %s210
    $region4: #{tpu_custom_call.1} parent=1 // loop_header_branch
      %26 = sbr.rel (%p24) target = $region8
    $region5: #{tpu_custom_call.1} parent=1 // loop_body
      %s28 = ssub.s32 %s23, 1
      %s29 = ssub.s32 %s23, 2
      %s36 = sadd.s32 1, %s31
      %p37 = scmp.ge.s32.totalorder %s36, 2
      %s38 = scalar_select %p37, 0, %s36
      %s39 = sadd.s32 1, %s30
      %s40 = scalar_select %p37, %s39, %s30
      %p41 = scmp.ge.s32.totalorder %s40, 2
      %s42 = scalar_select %p41, 0, %s40
      %s43 = ssub.s32 %s30, %s42
      %p44 = scmp.eq.s32.totalorder %s43, 0
      %s46 = sadd.s32 %s45, 1
      %s47 = scalar_select %p44, %s45, %s46
      %p50 = pneg %p44
      %p51 = scmp.eq.s32.totalorder %s23, 3
      %p52 = por %p50, %p51
      %p53 = scmp.ne.s32.totalorder %s45, %s48
      %p54 = scmp.eq.s32.totalorder %s23, 0
      %p55 = por %p53, %p54
      %p56 = scmp.ne.s32.totalorder %s45, %s48
      %p57 = scmp.eq.s32.totalorder %s28, 3
      %p58 = por %p56, %p57
      %p59 = scmp.ne.s32.totalorder %s48, %s49
      %p60 = scmp.eq.s32.totalorder %s28, 0
      %p61 = por %p59, %p60
      %p62 = scmp.ne.s32.totalorder %s48, %s49
      %p63 = scmp.eq.s32.totalorder %s29, 3
      %p64 = por %p62, %p63
      %p66 = scmp.ne.s32.totalorder %s49, %s65
      %p67 = scmp.eq.s32.totalorder %s29, 0
      %p68 = por %p66, %p67
      %s69 = ssub.s32 %s30, %s42
      %s70 = ssub.s32 %s31, %s38
      %s71 = sor.u32 %s69, %s70
      %p72 = scmp.eq.s32.totalorder %s71, 0
      %s74 = sadd.s32 %s73, 1
      %s75 = scalar_select %p72, %s73, %s74
      %p78 = pneg %p72
      %p79 = scmp.eq.s32.totalorder %s23, 3
      %p80 = por %p78, %p79
      %p81 = scmp.ne.s32.totalorder %s73, %s76
      %p82 = scmp.eq.s32.totalorder %s23, 0
      %p83 = por %p81, %p82
      %p84 = scmp.ne.s32.totalorder %s73, %s76
      %p85 = scmp.eq.s32.totalorder %s28, 3
      %p86 = por %p84, %p85
      %p87 = scmp.ne.s32.totalorder %s76, %s77
      %p88 = scmp.eq.s32.totalorder %s28, 0
      %p89 = por %p87, %p88
      %p90 = scmp.ne.s32.totalorder %s76, %s77
      %p91 = scmp.eq.s32.totalorder %s29, 3
      %p92 = por %p90, %p91
      %p94 = scmp.ne.s32.totalorder %s77, %s93
      %p95 = scmp.eq.s32.totalorder %s29, 0
      %p96 = por %p94, %p95
      %s98 = sadd.s32 %s97, 1
      %p101 = scmp.eq.s32.totalorder %s23, 3
      %p102 = scmp.ne.s32.totalorder %s97, %s99
      %p103 = scmp.eq.s32.totalorder %s23, 0
      %p104 = por %p102, %p103
      %p105 = scmp.ne.s32.totalorder %s97, %s99
      %p106 = scmp.eq.s32.totalorder %s28, 3
      %p107 = por %p105, %p106
      %p108 = scmp.ne.s32.totalorder %s99, %s100
      %p109 = scmp.eq.s32.totalorder %s28, 0
      %p110 = por %p108, %p109
      %p111 = scmp.ne.s32.totalorder %s99, %s100
      %p112 = scmp.eq.s32.totalorder %s29, 3
      %p113 = por %p111, %p112
      %p115 = scmp.ne.s32.totalorder %s100, %s114
      %p116 = scmp.eq.s32.totalorder %s29, 0
      %p117 = por %p115, %p116
      %s119 = sadd.s32 %s118, 1
      %p122 = scmp.eq.s32.totalorder %s23, 3
      %p123 = scmp.ne.s32.totalorder %s118, %s120
      %p124 = scmp.eq.s32.totalorder %s23, 0
      %p125 = por %p123, %p124
      %p126 = scmp.ne.s32.totalorder %s118, %s120
      %p127 = scmp.eq.s32.totalorder %s28, 3
      %p128 = por %p126, %p127
      %p129 = scmp.ne.s32.totalorder %s120, %s121
      %p130 = scmp.eq.s32.totalorder %s28, 0
      %p131 = por %p129, %p130
      %p132 = scmp.ne.s32.totalorder %s120, %s121
      %p133 = scmp.eq.s32.totalorder %s29, 3
      %p134 = por %p132, %p133
      %p136 = scmp.ne.s32.totalorder %s121, %s135
      %p137 = scmp.eq.s32.totalorder %s29, 0
      %p138 = por %p136, %p137
      %s140 = sadd.s32 %s139, 1
      %p143 = scmp.eq.s32.totalorder %s23, 3
      %p144 = scmp.ne.s32.totalorder %s139, %s141
      %p145 = scmp.eq.s32.totalorder %s23, 0
      %p146 = por %p144, %p145
      %p147 = scmp.ne.s32.totalorder %s139, %s141
      %p148 = scmp.eq.s32.totalorder %s28, 3
      %p149 = por %p147, %p148
      %p150 = scmp.ne.s32.totalorder %s141, %s142
      %p151 = scmp.eq.s32.totalorder %s28, 0
      %p152 = por %p150, %p151
      %p153 = scmp.ne.s32.totalorder %s141, %s142
      %p154 = scmp.eq.s32.totalorder %s29, 3
      %p155 = por %p153, %p154
      %p157 = scmp.ne.s32.totalorder %s142, %s156
      %p158 = scmp.eq.s32.totalorder %s29, 0
      %p159 = por %p157, %p158
      %s161 = sadd.s32 %s160, 1
      %p164 = scmp.eq.s32.totalorder %s23, 3
      %p165 = scmp.ne.s32.totalorder %s160, %s162
      %p166 = scmp.eq.s32.totalorder %s23, 0
      %p167 = por %p165, %p166
      %p168 = scmp.ne.s32.totalorder %s160, %s162
      %p169 = scmp.eq.s32.totalorder %s28, 3
      %p170 = por %p168, %p169
      %p171 = scmp.ne.s32.totalorder %s162, %s163
      %p172 = scmp.eq.s32.totalorder %s28, 0
      %p173 = por %p171, %p172
      %p174 = scmp.ne.s32.totalorder %s162, %s163
      %p175 = scmp.eq.s32.totalorder %s29, 3
      %p176 = por %p174, %p175
      %p178 = scmp.ne.s32.totalorder %s163, %s177
      %p179 = scmp.eq.s32.totalorder %s29, 0
      %p180 = por %p178, %p179
      %s182 = sadd.s32 %s181, 1
      %p185 = scmp.eq.s32.totalorder %s23, 3
      %p186 = scmp.ne.s32.totalorder %s181, %s183
      %p187 = scmp.eq.s32.totalorder %s23, 0
      %p188 = por %p186, %p187
      %p189 = scmp.ne.s32.totalorder %s181, %s183
      %p190 = scmp.eq.s32.totalorder %s28, 3
      %p191 = por %p189, %p190
      %p192 = scmp.ne.s32.totalorder %s183, %s184
      %p193 = scmp.eq.s32.totalorder %s28, 0
      %p194 = por %p192, %p193
      %p195 = scmp.ne.s32.totalorder %s183, %s184
      %p196 = scmp.eq.s32.totalorder %s29, 3
      %p197 = por %p195, %p196
      %p199 = scmp.ne.s32.totalorder %s184, %s198
      %p200 = scmp.eq.s32.totalorder %s29, 0
      %p201 = por %p199, %p200
      %s202 = ssub.s32 %s30, %s42
      %s203 = ssub.s32 %s31, %s38
      %s204 = sor.u32 %s202, %s203
      %p205 = scmp.eq.s32.totalorder %s204, 0
      %s207 = sadd.s32 %s206, 1
      %s208 = scalar_select %p205, %s206, %s207
      %p211 = pneg %p205
      %p212 = scmp.eq.s32.totalorder %s23, 3
      %p213 = por %p211, %p212
      %p214 = scmp.ne.s32.totalorder %s206, %s209
      %p215 = scmp.eq.s32.totalorder %s23, 0
      %p216 = por %p214, %p215
      %p217 = scmp.ne.s32.totalorder %s206, %s209
      %p218 = scmp.eq.s32.totalorder %s28, 3
      %p219 = por %p217, %p218
      %p220 = scmp.ne.s32.totalorder %s209, %s210
      %p221 = scmp.eq.s32.totalorder %s28, 0
      %p222 = por %p220, %p221
      %p223 = scmp.ne.s32.totalorder %s209, %s210
      %p224 = scmp.eq.s32.totalorder %s29, 3
      %p225 = por %p223, %p224
      %p227 = scmp.ne.s32.totalorder %s210, %s226
      %p228 = scmp.eq.s32.totalorder %s29, 0
      %p229 = por %p227, %p228
      %p230 = scmp.le.s32.totalorder 1, %s23
      %p231 = scmp.lt.s32.totalorder %s23, 5
      %p232 = pnand %p230, %p231
      %p233 = pneg %p232
      // Predicated region
      $region9: #{tpu_custom_call.1} parent=5 // pred_check
        _
      $region10: #{tpu_custom_call.1} parent=5 // pred_check_branch
        %235 = sbr.rel (%p232) target = $region12
      $region11: #{tpu_custom_call.1} parent=5 // pred_region
        %s236 = ssub.s32 %s23, 1
        // Predicated region
        $region13: #{tpu_custom_call.1} parent=11 // pred_check
          %p237 = pneg %p110
        $region14: #{tpu_custom_call.1} parent=11 // pred_check_branch
          %239 = sbr.rel (%p237) target = $region16
        $region15: #{tpu_custom_call.1} parent=11 // pred_region
          _
        $region16: #{tpu_custom_call.1} parent=11 // pred_fallthru
          _
        // Predicated region
        $region17: #{tpu_custom_call.1} parent=11 // pred_check
          %p240 = pneg %p131
        $region18: #{tpu_custom_call.1} parent=11 // pred_check_branch
          %242 = sbr.rel (%p240) target = $region20
        $region19: #{tpu_custom_call.1} parent=11 // pred_region
          _
        $region20: #{tpu_custom_call.1} parent=11 // pred_fallthru
          _
        // Predicated region
        $region21: #{tpu_custom_call.1} parent=11 // pred_check
          %p243 = pneg %p152
        $region22: #{tpu_custom_call.1} parent=11 // pred_check_branch
          %245 = sbr.rel (%p243) target = $region24
        $region23: #{tpu_custom_call.1} parent=11 // pred_region
          _
        $region24: #{tpu_custom_call.1} parent=11 // pred_fallthru
          _
        // Predicated region
        $region25: #{tpu_custom_call.1} parent=11 // pred_check
          %p246 = pneg %p173
        $region26: #{tpu_custom_call.1} parent=11 // pred_check_branch
          %248 = sbr.rel (%p246) target = $region28
        $region27: #{tpu_custom_call.1} parent=11 // pred_region
          _
        $region28: #{tpu_custom_call.1} parent=11 // pred_fallthru
          _
        // Predicated region
        $region29: #{tpu_custom_call.1} parent=11 // pred_check
          %p249 = pneg %p194
        $region30: #{tpu_custom_call.1} parent=11 // pred_check_branch
          %251 = sbr.rel (%p249) target = $region32
        $region31: #{tpu_custom_call.1} parent=11 // pred_region
          _
        $region32: #{tpu_custom_call.1} parent=11 // pred_fallthru
          _
      $region12: #{tpu_custom_call.1} parent=5 // pred_fallthru
        _
      %p252 = scmp.lt.s32.totalorder %s23, 4
      // Predicated region
      $region33: #{tpu_custom_call.1} parent=5 // pred_check
        %p253 = pneg %p252
      $region34: #{tpu_custom_call.1} parent=5 // pred_check_branch
        %255 = sbr.rel (%p253) target = $region36
      $region35: #{tpu_custom_call.1} parent=5 // pred_region
        // Predicated region
        $region37: #{tpu_custom_call.1} parent=35 // pred_check
          %p256 = pneg %p55
        $region38: #{tpu_custom_call.1} parent=35 // pred_check_branch
          %258 = sbr.rel (%p256) target = $region40
        $region39: #{tpu_custom_call.1} parent=35 // pred_region
          %s259 = sand.u32 %s45, 1
          %s260 = scalar_lea.sflag [#allocation4], %s259
          %s261 = sand.u32 %s45, 1
          %s262 = smul.addr %s261, 32
          %s263 = scalar_lea.vmem [#allocation3], %s262
          %265 = vsyncadd %s260, 0
          %s266 = smul.addr %s30, 4
          %s267 = smul.addr %s266, 8
          %s268 = scalar_lea.hbm %s0, %s267
          %s269 = sshll.u32 %s268, 4
          %s270 = int_to_ptr.hbm [resolvable:$true] %s269
          %s271 = sshll.u32 %s263, 4
          %s272 = int_to_ptr.vmem [resolvable:$true] %s271
          %277 = dma.hbm_to_vmem [thread:$0]  %s270, 512, %s272, %s260, 256, 256, 16
        $region40: #{tpu_custom_call.1} parent=35 // pred_fallthru
          _
        // Predicated region
        $region41: #{tpu_custom_call.1} parent=35 // pred_check
          %p278 = pneg %p83
        $region42: #{tpu_custom_call.1} parent=35 // pred_check_branch
          %280 = sbr.rel (%p278) target = $region44
        $region43: #{tpu_custom_call.1} parent=35 // pred_region
          %s281 = sand.u32 %s73, 1
          %s282 = scalar_lea.sflag [#allocation7], %s281
          %s283 = sand.u32 %s73, 1
          %s284 = smul.addr %s283, 16
          %s285 = scalar_lea.vmem [#allocation6], %s284
          %287 = vsyncadd %s282, 0
          %s288 = smul.addr %s30, 4
          %s289 = sadd.s32 %s31, %s288
          %s290 = smul.addr %s289, 8
          %s291 = scalar_lea.hbm %s1, %s290
          %s292 = sshll.u32 %s291, 4
          %s293 = int_to_ptr.hbm [resolvable:$true] %s292
          %s294 = sshll.u32 %s285, 4
          %s295 = int_to_ptr.vmem [resolvable:$true] %s294
          %300 = dma.hbm_to_vmem [thread:$0]  %s293, 256, %s295, %s282, 256, 128, 8
        $region44: #{tpu_custom_call.1} parent=35 // pred_fallthru
          _
      $region36: #{tpu_custom_call.1} parent=5 // pred_fallthru
        _
      %p301 = scmp.le.s32.totalorder 1, %s23
      %p302 = scmp.lt.s32.totalorder %s23, 5
      %p303 = pnand %p301, %p302
      %p304 = pneg %p303
      // Predicated region
      $region45: #{tpu_custom_call.1} parent=5 // pred_check
        _
      $region46: #{tpu_custom_call.1} parent=5 // pred_check_branch
        %306 = sbr.rel (%p303) target = $region48
      $region47: #{tpu_custom_call.1} parent=5 // pred_region
        %s307 = ssub.s32 %s23, 1
        %s308 = sand.u32 %s48, 1
        %s309 = scalar_lea.sflag [#allocation4], %s308
        %s310 = sand.u32 %s48, 1
        %s311 = smul.addr %s310, 32
        %s312 = scalar_lea.vmem [#allocation3], %s311
        // Predicated region
        $region49: #{tpu_custom_call.1} parent=47 // pred_check
          %p313 = pneg %p61
        $region50: #{tpu_custom_call.1} parent=47 // pred_check_branch
          %315 = sbr.rel (%p313) target = $region52
        $region51: #{tpu_custom_call.1} parent=47 // pred_region
          %317 = dma.done %s309, 512
        $region52: #{tpu_custom_call.1} parent=47 // pred_fallthru
          _
        %s318 = sand.u32 %s76, 1
        %s319 = scalar_lea.sflag [#allocation7], %s318
        %s320 = sand.u32 %s76, 1
        %s321 = smul.addr %s320, 16
        %s322 = scalar_lea.vmem [#allocation6], %s321
        // Predicated region
        $region53: #{tpu_custom_call.1} parent=47 // pred_check
          %p323 = pneg %p89
        $region54: #{tpu_custom_call.1} parent=47 // pred_check_branch
          %325 = sbr.rel (%p323) target = $region56
        $region55: #{tpu_custom_call.1} parent=47 // pred_region
          %327 = dma.done %s319, 256
        $region56: #{tpu_custom_call.1} parent=47 // pred_fallthru
          _
        %s328 = sand.u32 %s48, 1
        %s329 = scalar_lea.sflag [#allocation4], %s328
        %s330 = sand.u32 %s48, 1
        %s331 = smul.addr %s330, 32
        %s332 = scalar_lea.vmem [#allocation3], %s331
        %p333 = pneg %p61
        %p334 = pneg %p58
        %s335 = sand.u32 %s76, 1
        %s336 = scalar_lea.sflag [#allocation7], %s335
        %s337 = sand.u32 %s76, 1
        %s338 = smul.addr %s337, 16
        %s339 = scalar_lea.vmem [#allocation6], %s338
        %p340 = pneg %p89
        %p341 = pneg %p86
        %p342 = pneg %p110
        %p343 = pneg %p107
        %p344 = pneg %p131
        %p345 = pneg %p128
        %p346 = pneg %p152
        %p347 = pneg %p149
        %p348 = pneg %p173
        %p349 = pneg %p170
        %p350 = pneg %p194
        %p351 = pneg %p191
        %p352 = pneg %p222
        %p353 = pneg %p219
        %s354 = sand.u32 %s209, 1
        %s355 = scalar_lea.sflag [#allocation5], %s354
        %s356 = sand.u32 %s209, 1
        %s357 = smul.addr %s356, 16
        %s358 = scalar_lea.vmem [#allocation8], %s357
        %v360 = vld [vmem:[%s312] sm:$0xff]
        %v361 = vld [vmem:[%s312 + $0x8] sm:$0xff]
        %v362 = vld [vmem:[%s312 + $0x10] sm:$0xff]
        %v363 = vld [vmem:[%s312 + $0x18] sm:$0xff]
        %v364 = vld [vmem:[%s322] sm:$0xff]
        %v365 = vld [vmem:[%s322 + $0x8] sm:$0xff]
        %v366 = vpack.c.bf16 %v362, %v360
        %v367 = vpack.c.bf16 %v363, %v361
        %v368 = vpack.c.bf16 %v365, %v364
        %v369 = vld [vmem:[%s2] sm:$0xff]
        %v370 = vld [vmem:[%s2 + $0x8] sm:$0xff]
        %v371 = vpack.c.bf16 %v370, %v369
        %v372 = vld [vmem:[%s4] sm:$0xff]
        %v373 = vld [vmem:[%s4 + $0x8] sm:$0xff]
        %v374 = vpack.c.bf16 %v373, %v372
        %v375 = vld [vmem:[%s3] sm:$0xff]
        %v376 = vld [vmem:[%s3 + $0x8] sm:$0xff]
        %378 = vset.pattern.permute.xlu0 0
        %379 = vperm.xlu0 %378, %v375
        %v380 = vpop.permute.xlu0 %379
        %383 = vset.pattern.permute.xlu0 0
        %384 = vperm.xlu0 %383, %v376
        %v385 = vpop.permute.xlu0 %384
        %vm387 = vcmask 130048
        %v389 = vsel %vm387, %v371, 0
        %391 = vmatpush.bf16.msra.mxu0 0
        %392 = vmatpush.bf16.msra.mxu0 0
        %393 = vmatpush.bf16.msra.mxu0 0
        %394 = vmatpush.bf16.msra.mxu0 0
        %395 = vmatpush.bf16.msra.mxu0 0
        %396 = vmatpush.bf16.msra.mxu0 0
        %397 = vmatpush.bf16.msra.mxu0 0
        %398 = vmatpush.bf16.msra.mxu0 %v368
        %399 = vmatmul.bf16.gmra.mxu0 %v389
        %v400 = vpop.f32.mrf.mxu0
        %v401 = vadd.f32 %v380, %v400
        %v402 = vpop.f32.mrf.mxu0
        %v403 = vadd.f32 %v385, %v402
        %404 = vdwg.mxu0
        %v405 = vpack.c.bf16 %v403, %v401
        %406 = vxpose.binary.xlu0.c.b16.start [1/16] %v367, %v366, 128
        %407 = vxpose.binary.xlu0.c.b16.cont [2/16] 0, 0, 128
        %408 = vxpose.binary.xlu0.c.b16.cont [3/16] 0, 0, 128
        %409 = vxpose.binary.xlu0.c.b16.cont [4/16] 0, 0, 128
        %410 = vxpose.binary.xlu0.c.b16.cont [5/16] 0, 0, 128
        %411 = vxpose.binary.xlu0.c.b16.cont [6/16] 0, 0, 128
        %412 = vxpose.binary.xlu0.c.b16.cont [7/16] 0, 0, 128
        %413 = vxpose.binary.xlu0.c.b16.end [8/16] 0, 0, 128
        %v414 = vpop.trf.xlu0
        %v415 = vpop.trf.xlu0
        %v416 = vpop.trf.xlu0
        %v417 = vpop.trf.xlu0
        %v418 = vpop.trf.xlu0
        %v419 = vpop.trf.xlu0
        %v420 = vpop.trf.xlu0
        %v421 = vpop.trf.xlu0
        %v422 = vpop.trf.xlu0
        %v423 = vpop.trf.xlu0
        %v424 = vpop.trf.xlu0
        %v425 = vpop.trf.xlu0
        %v426 = vpop.trf.xlu0
        %v427 = vpop.trf.xlu0
        %v428 = vpop.trf.xlu0
        %v429 = vpop.trf.xlu0
        %v431 = vsel %vm387, %v414, 0
        %v434 = vsel %vm387, %v416, 0
        %v437 = vsel %vm387, %v418, 0
        %v440 = vsel %vm387, %v420, 0
        %v443 = vsel %vm387, %v422, 0
        %v446 = vsel %vm387, %v424, 0
        %v449 = vsel %vm387, %v426, 0
        %v452 = vsel %vm387, %v428, 0
        %v455 = vsel %vm387, %v415, 0
        %v458 = vsel %vm387, %v417, 0
        %v461 = vsel %vm387, %v419, 0
        %v464 = vsel %vm387, %v421, 0
        %v467 = vsel %vm387, %v423, 0
        %v470 = vsel %vm387, %v425, 0
        %v473 = vsel %vm387, %v427, 0
        %v476 = vsel %vm387, %v429, 0
        %478 = vmatpush.bf16.msra.mxu0 0
        %479 = vmatpush.bf16.msra.mxu0 0
        %480 = vmatpush.bf16.msra.mxu0 0
        %481 = vmatpush.bf16.msra.mxu0 0
        %482 = vmatpush.bf16.msra.mxu0 0
        %483 = vmatpush.bf16.msra.mxu0 0
        %484 = vmatpush.bf16.msra.mxu0 0
        %485 = vmatpush.bf16.msra.mxu0 %v405
        %486 = vmatmul.bf16.gmra.mxu0 %v431
        %v487 = vpop.f32.mrf.mxu0
        %v488 = vadd.f32 0.0, %v487
        %v489 = vpop.f32.mrf.mxu0
        %v490 = vadd.f32 0.0, %v489
        %491 = vmatmul.bf16.gmra.mxu0 %v434
        %v492 = vpop.f32.mrf.mxu0
        %v493 = vadd.f32 0.0, %v492
        %v494 = vpop.f32.mrf.mxu0
        %v495 = vadd.f32 0.0, %v494
        %496 = vmatmul.bf16.gmra.mxu0 %v437
        %v497 = vpop.f32.mrf.mxu0
        %v498 = vadd.f32 0.0, %v497
        %v499 = vpop.f32.mrf.mxu0
        %v500 = vadd.f32 0.0, %v499
        %501 = vmatmul.bf16.gmra.mxu0 %v440
        %v502 = vpop.f32.mrf.mxu0
        %v503 = vadd.f32 0.0, %v502
        %v504 = vpop.f32.mrf.mxu0
        %v505 = vadd.f32 0.0, %v504
        %506 = vmatmul.bf16.gmra.mxu0 %v443
        %v507 = vpop.f32.mrf.mxu0
        %v508 = vadd.f32 0.0, %v507
        %v509 = vpop.f32.mrf.mxu0
        %v510 = vadd.f32 0.0, %v509
        %511 = vmatmul.bf16.gmra.mxu0 %v446
        %v512 = vpop.f32.mrf.mxu0
        %v513 = vadd.f32 0.0, %v512
        %v514 = vpop.f32.mrf.mxu0
        %v515 = vadd.f32 0.0, %v514
        %516 = vmatmul.bf16.gmra.mxu0 %v449
        %v517 = vpop.f32.mrf.mxu0
        %v518 = vadd.f32 0.0, %v517
        %v519 = vpop.f32.mrf.mxu0
        %v520 = vadd.f32 0.0, %v519
        %521 = vmatmul.bf16.gmra.mxu0 %v452
        %v522 = vpop.f32.mrf.mxu0
        %v523 = vadd.f32 0.0, %v522
        %v524 = vpop.f32.mrf.mxu0
        %v525 = vadd.f32 0.0, %v524
        %526 = vmatmul.bf16.gmra.mxu0 %v455
        %v527 = vpop.f32.mrf.mxu0
        %v528 = vadd.f32 0.0, %v527
        %v529 = vpop.f32.mrf.mxu0
        %v530 = vadd.f32 0.0, %v529
        %531 = vmatmul.bf16.gmra.mxu0 %v458
        %v532 = vpop.f32.mrf.mxu0
        %v533 = vadd.f32 0.0, %v532
        %v534 = vpop.f32.mrf.mxu0
        %v535 = vadd.f32 0.0, %v534
        %536 = vmatmul.bf16.gmra.mxu0 %v461
        %v537 = vpop.f32.mrf.mxu0
        %v538 = vadd.f32 0.0, %v537
        %v539 = vpop.f32.mrf.mxu0
        %v540 = vadd.f32 0.0, %v539
        %541 = vmatmul.bf16.gmra.mxu0 %v464
        %v542 = vpop.f32.mrf.mxu0
        %v543 = vadd.f32 0.0, %v542
        %v544 = vpop.f32.mrf.mxu0
        %v545 = vadd.f32 0.0, %v544
        %546 = vmatmul.bf16.gmra.mxu0 %v467
        %v547 = vpop.f32.mrf.mxu0
        %v548 = vadd.f32 0.0, %v547
        %v549 = vpop.f32.mrf.mxu0
        %v550 = vadd.f32 0.0, %v549
        %551 = vmatmul.bf16.gmra.mxu0 %v470
        %v552 = vpop.f32.mrf.mxu0
        %v553 = vadd.f32 0.0, %v552
        %v554 = vpop.f32.mrf.mxu0
        %v555 = vadd.f32 0.0, %v554
        %556 = vmatmul.bf16.gmra.mxu0 %v473
        %v557 = vpop.f32.mrf.mxu0
        %v558 = vadd.f32 0.0, %v557
        %v559 = vpop.f32.mrf.mxu0
        %v560 = vadd.f32 0.0, %v559
        %561 = vmatmul.bf16.gmra.mxu0 %v476
        %v562 = vpop.f32.mrf.mxu0
        %v563 = vadd.f32 0.0, %v562
        %v564 = vpop.f32.mrf.mxu0
        %v565 = vadd.f32 0.0, %v564
        %566 = vdwg.mxu0
        %v567 = vmax.f32 %v488, %v498
        %v568 = vmax.f32 %v490, %v500
        %v569 = vmax.f32 %v493, %v503
        %v570 = vmax.f32 %v495, %v505
        %v571 = vmax.f32 %v567, %v508
        %v572 = vmax.f32 %v568, %v510
        %v573 = vmax.f32 %v569, %v513
        %v574 = vmax.f32 %v570, %v515
        %v575 = vmax.f32 %v571, %v518
        %v576 = vmax.f32 %v572, %v520
        %v577 = vmax.f32 %v573, %v523
        %v578 = vmax.f32 %v574, %v525
        %v579 = vmax.f32 %v575, %v528
        %v580 = vmax.f32 %v576, %v530
        %v581 = vmax.f32 %v577, %v533
        %v582 = vmax.f32 %v578, %v535
        %v583 = vmax.f32 %v579, %v538
        %v584 = vmax.f32 %v580, %v540
        %v585 = vmax.f32 %v581, %v543
        %v586 = vmax.f32 %v582, %v545
        %v587 = vmax.f32 %v583, %v548
        %v588 = vmax.f32 %v584, %v550
        %v589 = vmax.f32 %v585, %v553
        %v590 = vmax.f32 %v586, %v555
        %v591 = vmax.f32 %v587, %v558
        %v592 = vmax.f32 %v588, %v560
        %v593 = vmax.f32 %v589, %v563
        %v594 = vmax.f32 %v590, %v565
        %v595 = vmax.f32 %v591, %v592
        %v596 = vmax.f32 %v593, %v594
        %v597 = vmax.f32 %v595, %v596
        %v598 = vrot.slane %v597, 4
        %v599 = vmax.f32 %v597, %v598
        %v600 = vrot.slane %v599, 2
        %v601 = vmax.f32 %v599, %v600
        %v602 = vrot.slane %v601, 1
        %v603 = vmax.f32 %v601, %v602
        %v604 = vsub.f32 %v488, %v603
        %v605 = vsub.f32 %v490, %v603
        %v606 = vsub.f32 %v493, %v603
        %v607 = vsub.f32 %v495, %v603
        %v608 = vsub.f32 %v498, %v603
        %v609 = vsub.f32 %v500, %v603
        %v610 = vsub.f32 %v503, %v603
        %v611 = vsub.f32 %v505, %v603
        %v612 = vsub.f32 %v508, %v603
        %v613 = vsub.f32 %v510, %v603
        %v614 = vsub.f32 %v513, %v603
        %v615 = vsub.f32 %v515, %v603
        %v616 = vsub.f32 %v518, %v603
        %v617 = vsub.f32 %v520, %v603
        %v618 = vsub.f32 %v523, %v603
        %v619 = vsub.f32 %v525, %v603
        %v620 = vsub.f32 %v528, %v603
        %v621 = vsub.f32 %v530, %v603
        %v622 = vsub.f32 %v533, %v603
        %v623 = vsub.f32 %v535, %v603
        %v624 = vsub.f32 %v538, %v603
        %v625 = vsub.f32 %v540, %v603
        %v626 = vsub.f32 %v543, %v603
        %v627 = vsub.f32 %v545, %v603
        %v628 = vsub.f32 %v548, %v603
        %v629 = vsub.f32 %v550, %v603
        %v630 = vsub.f32 %v553, %v603
        %v631 = vsub.f32 %v555, %v603
        %v632 = vsub.f32 %v558, %v603
        %v633 = vsub.f32 %v560, %v603
        %v634 = vsub.f32 %v563, %v603
        %v635 = vsub.f32 %v565, %v603
        %v636 = vmul.f32 %v604, 1.442695
        %v637 = vpow.pop %v636
        %v638 = vmul.f32 %v605, 1.442695
        %v639 = vpow.pop %v638
        %v640 = vmul.f32 %v606, 1.442695
        %v641 = vpow.pop %v640
        %v642 = vmul.f32 %v607, 1.442695
        %v643 = vpow.pop %v642
        %v644 = vmul.f32 %v608, 1.442695
        %v645 = vpow.pop %v644
        %v646 = vmul.f32 %v609, 1.442695
        %v647 = vpow.pop %v646
        %v648 = vmul.f32 %v610, 1.442695
        %v649 = vpow.pop %v648
        %v650 = vmul.f32 %v611, 1.442695
        %v651 = vpow.pop %v650
        %v652 = vmul.f32 %v612, 1.442695
        %v653 = vpow.pop %v652
        %v654 = vmul.f32 %v613, 1.442695
        %v655 = vpow.pop %v654
        %v656 = vmul.f32 %v614, 1.442695
        %v657 = vpow.pop %v656
        %v658 = vmul.f32 %v615, 1.442695
        %v659 = vpow.pop %v658
        %v660 = vmul.f32 %v616, 1.442695
        %v661 = vpow.pop %v660
        %v662 = vmul.f32 %v617, 1.442695
        %v663 = vpow.pop %v662
        %v664 = vmul.f32 %v618, 1.442695
        %v665 = vpow.pop %v664
        %v666 = vmul.f32 %v619, 1.442695
        %v667 = vpow.pop %v666
        %v668 = vmul.f32 %v620, 1.442695
        %v669 = vpow.pop %v668
        %v670 = vmul.f32 %v621, 1.442695
        %v671 = vpow.pop %v670
        %v672 = vmul.f32 %v622, 1.442695
        %v673 = vpow.pop %v672
        %v674 = vmul.f32 %v623, 1.442695
        %v675 = vpow.pop %v674
        %v676 = vmul.f32 %v624, 1.442695
        %v677 = vpow.pop %v676
        %v678 = vmul.f32 %v625, 1.442695
        %v679 = vpow.pop %v678
        %v680 = vmul.f32 %v626, 1.442695
        %v681 = vpow.pop %v680
        %v682 = vmul.f32 %v627, 1.442695
        %v683 = vpow.pop %v682
        %v684 = vmul.f32 %v628, 1.442695
        %v685 = vpow.pop %v684
        %v686 = vmul.f32 %v629, 1.442695
        %v687 = vpow.pop %v686
        %v688 = vmul.f32 %v630, 1.442695
        %v689 = vpow.pop %v688
        %v690 = vmul.f32 %v631, 1.442695
        %v691 = vpow.pop %v690
        %v692 = vmul.f32 %v632, 1.442695
        %v693 = vpow.pop %v692
        %v694 = vmul.f32 %v633, 1.442695
        %v695 = vpow.pop %v694
        %v696 = vmul.f32 %v634, 1.442695
        %v697 = vpow.pop %v696
        %v698 = vmul.f32 %v635, 1.442695
        %v699 = vpow.pop %v698
        %v700 = vadd.f32 %v637, %v639
        %v701 = vadd.f32 %v700, %v641
        %v702 = vadd.f32 %v701, %v643
        %v703 = vadd.f32 %v702, %v645
        %v704 = vadd.f32 %v703, %v647
        %v705 = vadd.f32 %v704, %v649
        %v706 = vadd.f32 %v705, %v651
        %v707 = vadd.f32 %v706, %v653
        %v708 = vadd.f32 %v707, %v655
        %v709 = vadd.f32 %v708, %v657
        %v710 = vadd.f32 %v709, %v659
        %v711 = vadd.f32 %v710, %v661
        %v712 = vadd.f32 %v711, %v663
        %v713 = vadd.f32 %v712, %v665
        %v714 = vadd.f32 %v713, %v667
        %v715 = vadd.f32 %v714, %v669
        %v716 = vadd.f32 %v715, %v671
        %v717 = vadd.f32 %v716, %v673
        %v718 = vadd.f32 %v717, %v675
        %v719 = vadd.f32 %v718, %v677
        %v720 = vadd.f32 %v719, %v679
        %v721 = vadd.f32 %v720, %v681
        %v722 = vadd.f32 %v721, %v683
        %v723 = vadd.f32 %v722, %v685
        %v724 = vadd.f32 %v723, %v687
        %v725 = vadd.f32 %v724, %v689
        %v726 = vadd.f32 %v725, %v691
        %v727 = vadd.f32 %v726, %v693
        %v728 = vadd.f32 %v727, %v695
        %v729 = vadd.f32 %v728, %v697
        %v730 = vadd.f32 %v729, %v699
        %v731 = vrot.slane %v730, 4
        %v732 = vadd.f32 %v730, %v731
        %v733 = vrot.slane %v732, 2
        %v734 = vadd.f32 %v732, %v733
        %v735 = vrot.slane %v734, 1
        %v736 = vadd.f32 %v734, %v735
        %v737 = vrcp.pop %v736
        %v738 = vmul.f32 %v637, %v737
        %v739 = vmul.f32 %v639, %v737
        %v740 = vmul.f32 %v641, %v737
        %v741 = vmul.f32 %v643, %v737
        %v742 = vmul.f32 %v645, %v737
        %v743 = vmul.f32 %v647, %v737
        %v744 = vmul.f32 %v649, %v737
        %v745 = vmul.f32 %v651, %v737
        %v746 = vmul.f32 %v653, %v737
        %v747 = vmul.f32 %v655, %v737
        %v748 = vmul.f32 %v657, %v737
        %v749 = vmul.f32 %v659, %v737
        %v750 = vmul.f32 %v661, %v737
        %v751 = vmul.f32 %v663, %v737
        %v752 = vmul.f32 %v665, %v737
        %v753 = vmul.f32 %v667, %v737
        %v754 = vmul.f32 %v669, %v737
        %v755 = vmul.f32 %v671, %v737
        %v756 = vmul.f32 %v673, %v737
        %v757 = vmul.f32 %v675, %v737
        %v758 = vmul.f32 %v677, %v737
        %v759 = vmul.f32 %v679, %v737
        %v760 = vmul.f32 %v681, %v737
        %v761 = vmul.f32 %v683, %v737
        %v762 = vmul.f32 %v685, %v737
        %v763 = vmul.f32 %v687, %v737
        %v764 = vmul.f32 %v689, %v737
        %v765 = vmul.f32 %v691, %v737
        %v766 = vmul.f32 %v693, %v737
        %v767 = vmul.f32 %v695, %v737
        %v768 = vmul.f32 %v697, %v737
        %v769 = vmul.f32 %v699, %v737
        %v770 = vld [vmem:[%s5] sm:$0xff]
        %v771 = vld [vmem:[%s5 + $0x8] sm:$0xff]
        %773 = vset.pattern.permute.xlu0 0
        %774 = vperm.xlu0 %773, %v770
        %v775 = vpop.permute.xlu0 %774
        %778 = vset.pattern.permute.xlu0 0
        %779 = vperm.xlu0 %778, %v771
        %v780 = vpop.permute.xlu0 %779
        %v783 = vsel %vm387, %v374, 0
        %785 = vmatpush.bf16.msra.mxu0 0
        %786 = vmatpush.bf16.msra.mxu0 0
        %787 = vmatpush.bf16.msra.mxu0 0
        %788 = vmatpush.bf16.msra.mxu0 0
        %789 = vmatpush.bf16.msra.mxu0 0
        %790 = vmatpush.bf16.msra.mxu0 0
        %791 = vmatpush.bf16.msra.mxu0 0
        %792 = vmatpush.bf16.msra.mxu0 %v366
        %793 = vmatmul.bf16.gmra.mxu0 %v783
        %v794 = vpop.f32.mrf.mxu0
        %v795 = vadd.f32 %v775, %v794
        %v796 = vpop.f32.mrf.mxu0
        %v797 = vadd.f32 %v780, %v796
        %798 = vdwg.mxu0
        %799 = vmatpush.bf16.msra.mxu0 0
        %800 = vmatpush.bf16.msra.mxu0 0
        %801 = vmatpush.bf16.msra.mxu0 0
        %802 = vmatpush.bf16.msra.mxu0 0
        %803 = vmatpush.bf16.msra.mxu0 0
        %804 = vmatpush.bf16.msra.mxu0 0
        %805 = vmatpush.bf16.msra.mxu0 0
        %806 = vmatpush.bf16.msra.mxu0 %v367
        %807 = vmatmul.bf16.gmra.mxu0 %v783
        %v808 = vpop.f32.mrf.mxu0
        %v809 = vadd.f32 %v775, %v808
        %v810 = vpop.f32.mrf.mxu0
        %v811 = vadd.f32 %v780, %v810
        %812 = vdwg.mxu0
        %v813 = vpack.c.bf16 %v797, %v795
        %v814 = vpack.c.bf16 %v811, %v809
        %v815 = vpack.c.bf16 %v739, %v738
        %v816 = vpack.c.bf16 %v741, %v740
        %v817 = vpack.c.bf16 %v743, %v742
        %v818 = vpack.c.bf16 %v745, %v744
        %v819 = vpack.c.bf16 %v747, %v746
        %v820 = vpack.c.bf16 %v749, %v748
        %v821 = vpack.c.bf16 %v751, %v750
        %v822 = vpack.c.bf16 %v753, %v752
        %v823 = vpack.c.bf16 %v755, %v754
        %v824 = vpack.c.bf16 %v757, %v756
        %v825 = vpack.c.bf16 %v759, %v758
        %v826 = vpack.c.bf16 %v761, %v760
        %v827 = vpack.c.bf16 %v763, %v762
        %v828 = vpack.c.bf16 %v765, %v764
        %v829 = vpack.c.bf16 %v767, %v766
        %v830 = vpack.c.bf16 %v769, %v768
        %831 = vmatpush.bf16.msra.mxu0 %v822
        %832 = vmatpush.bf16.msra.mxu0 %v821
        %833 = vmatpush.bf16.msra.mxu0 %v820
        %834 = vmatpush.bf16.msra.mxu0 %v819
        %835 = vmatpush.bf16.msra.mxu0 %v818
        %836 = vmatpush.bf16.msra.mxu0 %v817
        %837 = vmatpush.bf16.msra.mxu0 %v816
        %838 = vmatpush.bf16.msra.mxu0 %v815
        %839 = vmatmul.bf16.gmra.mxu0 %v813
        %v840 = vpop.f32.mrf.mxu0
        %v841 = vadd.f32 0.0, %v840
        %v842 = vpop.f32.mrf.mxu0
        %v843 = vadd.f32 0.0, %v842
        %844 = vdwg.mxu0
        %845 = vmatpush.bf16.msra.mxu0 %v830
        %846 = vmatpush.bf16.msra.mxu0 %v829
        %847 = vmatpush.bf16.msra.mxu0 %v828
        %848 = vmatpush.bf16.msra.mxu0 %v827
        %849 = vmatpush.bf16.msra.mxu0 %v826
        %850 = vmatpush.bf16.msra.mxu0 %v825
        %851 = vmatpush.bf16.msra.mxu0 %v824
        %852 = vmatpush.bf16.msra.mxu0 %v823
        %853 = vmatmul.bf16.gmra.mxu0 %v814
        %v854 = vpop.f32.mrf.mxu0
        %v855 = vadd.f32 %v841, %v854
        %v856 = vpop.f32.mrf.mxu0
        %v857 = vadd.f32 %v843, %v856
        %858 = vdwg.mxu0
        %s859 = sld [smem:[#allocation2]]
        %v860 = vstv %s859
        %v861 = vmul.f32 %v860, %v855
        %v862 = vmul.f32 %v860, %v857
        %v863 = vadd.f32 %v861, %v364
        %v864 = vadd.f32 %v862, %v365
        %865 = vst [vmem:[%s358] sm:$0xff] %v863
        %866 = vst [vmem:[%s358 + $0x8] sm:$0xff] %v864
        %s867 = sand.u32 %s209, 1
        %s868 = scalar_lea.sflag [#allocation5], %s867
        %s869 = sand.u32 %s209, 1
        %s870 = smul.addr %s869, 16
        %s871 = scalar_lea.vmem [#allocation8], %s870
        // Predicated region
        $region57: #{tpu_custom_call.1} parent=47 // pred_check
          %p872 = pneg %p219
        $region58: #{tpu_custom_call.1} parent=47 // pred_check_branch
          %874 = sbr.rel (%p872) target = $region60
        $region59: #{tpu_custom_call.1} parent=47 // pred_region
          %876 = vsyncadd %s868, 0
          %s877 = smul.addr %s32, 4
          %s878 = sadd.s32 %s33, %s877
          %s879 = smul.addr %s878, 8
          %s880 = scalar_lea.hbm %s7, %s879
          %s881 = sshll.u32 %s871, 4
          %s882 = int_to_ptr.vmem [resolvable:$true] %s881
          %s883 = sshll.u32 %s880, 4
          %s884 = int_to_ptr.hbm [resolvable:$true] %s883
          %889 = dma.vmem_to_hbm [thread:$0]  %s882, 256, %s884, %s868, 128, 256, 8
        $region60: #{tpu_custom_call.1} parent=47 // pred_fallthru
          _
      $region48: #{tpu_custom_call.1} parent=5 // pred_fallthru
        _
      %p890 = scmp.le.s32.totalorder 2, %s23
      // Predicated region
      $region61: #{tpu_custom_call.1} parent=5 // pred_check
        %p891 = pneg %p890
      $region62: #{tpu_custom_call.1} parent=5 // pred_check_branch
        %893 = sbr.rel (%p891) target = $region64
      $region63: #{tpu_custom_call.1} parent=5 // pred_region
        %s894 = ssub.s32 %s23, 2
        // Predicated region
        $region65: #{tpu_custom_call.1} parent=63 // pred_check
          %p895 = pneg %p225
        $region66: #{tpu_custom_call.1} parent=63 // pred_check_branch
          %897 = sbr.rel (%p895) target = $region68
        $region67: #{tpu_custom_call.1} parent=63 // pred_region
          %s898 = sand.u32 %s210, 1
          %s899 = scalar_lea.sflag [#allocation5], %s898
          %s900 = sand.u32 %s210, 1
          %s901 = smul.addr %s900, 16
          %s902 = scalar_lea.vmem [#allocation8], %s901
          %904 = dma.done %s899, 256
        $region68: #{tpu_custom_call.1} parent=63 // pred_fallthru
          _
      $region64: #{tpu_custom_call.1} parent=5 // pred_fallthru
        _
    $region6: #{tpu_custom_call.1} parent=1 // loop_footer
      %s27 = sadd.s32 1, %s23
    $region7: #{tpu_custom_call.1} parent=1 // loop_footer_branch
      %22 = sbr.rel target = $region3
    $region8: #{tpu_custom_call.1} parent=1 // loop_exit
      _
    %905 = vsyncpa [#allocation4], 1
    %s906 = scalar_lea.sflag [#allocation4], 1
    %907 = vsyncpa %s906, 1
    %908 = vsyncpa [#allocation7], 1
    %s909 = scalar_lea.sflag [#allocation7], 1
    %910 = vsyncpa %s909, 1
    %911 = vsyncpa [#allocation5], 1
    %s912 = scalar_lea.sflag [#allocation5], 1
    %913 = vsyncpa %s912, 1

</llo_original>
